<compile_context>
chip_gen: v7x
topology: tpu7x:2x2x1
jax: 0.10.0
libtpu: 0.0.40
codegen_flags: <defaults>
</compile_context>

<pallas_src>
import jax
import jax.numpy as jnp
from jax.experimental import pallas as pl
from jax.experimental.pallas import tpu as pltpu


# ----------------------------------------------------------------------------
# Pallas kernel (optional fusion point): lane-dense full-tile identity copy.
# ----------------------------------------------------------------------------
def _identity_copy_kernel(x_ref, o_ref):
    o_ref[...] = x_ref[...]


def _vmem_budget_bytes():
    """Generation-aware VMEM budget for the double-buffered copy tiles."""
    try:
        cap = int(getattr(pltpu.get_tpu_info(), "vmem_capacity_bytes", 64 << 20))
    except Exception:
        cap = 64 << 20  # conservative (v7x-like) fallback
    if cap >= (100 << 20):   # v5e / v6e: 128 MiB physical VMEM
        return 56 << 20
    return 24 << 20          # v7x: 64 MiB physical / 32 MiB scoped VMEM


def _tensorcores_per_chip():
    """2 TensorCores per chip on v4 / v5p / v7x; 1 on v5e / v6e."""
    try:
        kind = jax.devices()[0].device_kind.lower()
    except Exception:
        return 1
    for tag in ("v4", "v5p", "v7", "7x"):
        if tag in kind:
            return 2
    return 1


def _choose_row_tile(rows, row_bytes, budget_bytes, ncores):
    """Largest legal row tile whose double-buffered in+out footprint
    (~4 * tile * row_bytes) fits the budget; prefers a tile dividing `rows`
    (no padded partial block) and >=2 grid steps on 2-TC chips."""
    if rows <= 8:
        return rows  # full-extent block: always legal, trivially fits VMEM
    max_rows = max(1, budget_bytes // (4 * max(1, row_bytes)))
    if ncores >= 2 and rows >= 16:
        # Cap so the grid has >= 2 steps and megacore can shard the copy.
        max_rows = min(max_rows, -(-rows // 2))
    if max_rows >= rows:
        return rows  # single full block (1-TC chips, small arrays)
    tb_max = max(8, (min(max_rows, rows) // 8) * 8)
    # Prefer a tile that divides rows (avoids a masked partial final block).
    for tb in range(tb_max, 7, -8):
        if rows % tb == 0:
            return tb
    return tb_max


def _lane_dense_2d(x2d):
    """Re-block (R, W) to a lane-dense slab (last dim a multiple of 128) via a
    free wrapper-side reshape when possible; otherwise return unchanged."""
    R, W = x2d.shape
    if W % 128 == 0:
        return x2d
    total = R * W
    for w in (16384, 8192, 4096, 2048, 1024, 512, 256, 128):
        if total % w == 0:
            return x2d.reshape(total // w, w)
    return x2d  # fallback: handled with a single full-array block


def _pallas_copy_2d(x, *, alias_input_output=False):
    """Optional Pallas fusion point: batched lane-dense identity copy.
    Returns an array with the same shape as `x`."""
    orig_shape = x.shape
    x2d = _lane_dense_2d(x)
    R, W = x2d.shape
    itemsize = jnp.dtype(x2d.dtype).itemsize
    row_bytes = W * itemsize

    budget = _vmem_budget_bytes()
    ncores = _tensorcores_per_chip()

    if W % 128 == 0:
        tb = _choose_row_tile(R, row_bytes, budget, ncores)
    else:
        tb = R  # non-lane-dense fallback: one full-array block (always legal)

    grid = (pl.cdiv(R, tb),)

    # Explicit scoped-VMEM limit sized to the chosen tiles (2 bufs in + 2 out),
    # so the largest-legal tile also compiles on v5e's 16 MiB default.
    vmem_limit = int(min(max(4 * tb * row_bytes + (2 << 20), 16 << 20), 96 << 20))

    cost = pl.CostEstimate(
        flops=0,
        transcendentals=0,
        bytes_accessed=2 * R * W * itemsize,
    )

    extra = {}
    if alias_input_output:
        # With a donated input the output reuses the input HBM buffer.
        extra["input_output_aliases"] = {0: 0}

    out2d = pl.pallas_call(
        _identity_copy_kernel,
        out_shape=jax.ShapeDtypeStruct((R, W), x2d.dtype),
        grid=grid,
        in_specs=[pl.BlockSpec((tb, W), lambda i: (i, 0))],
        out_specs=pl.BlockSpec((tb, W), lambda i: (i, 0)),
        compiler_params=pltpu.CompilerParams(
            dimension_semantics=("parallel",),
            vmem_limit_bytes=vmem_limit,
        ),
        cost_estimate=cost,
        **extra,
    )(x2d)
    return out2d.reshape(orig_shape)


# ----------------------------------------------------------------------------
# Module port.
# ----------------------------------------------------------------------------
class SpecificEmotionModel:
    """JAX/Pallas port of specificEmotionModel (no learnable parameters)."""

    def __init__(self, numCommonSignals, numActivityFeatures, activityNames,
                 numBasicEmotions, numInterpreterHeads, numSubjects,
                 emotionNames, featureNames, numSignals, numSignalFeatures):
        self.numActivityFeatures = numActivityFeatures
        self.numInterpreterHeads = numInterpreterHeads
        self.numCommonSignals = numCommonSignals
        self.numBasicEmotions = numBasicEmotions
        self.numActivities = len(activityNames)
        self.numEmotions = len(emotionNames)
        self.activityNames = activityNames
        self.featureNames = featureNames
        self.emotionNames = emotionNames
        self.numSubjects = numSubjects
        # shapInterface references these attributes (set elsewhere in the
        # original codebase); we carry them explicitly.
        self.numSignals = numSignals
        self.numSignalFeatures = numSignalFeatures
        self.resetModel()

    def resetModel(self):
        self.trainingLosses_signalReconstruction = []
        self.testingLosses_signalReconstruction = []
        self.trainingLosses_manifoldMean = []
        self.testingLosses_manifoldMean = []
        self.trainingLosses_manifoldSTD = []
        self.testingLosses_manifoldSTD = []

    def forward(self):
        # Exact semantics of the PyTorch module: forward() -> None.
        return None

    def shap_interface(self, reshapedSignalFeatures, use_pallas_copy=False,
                       alias_input_output=False):
        batchSize, numFeatures = reshapedSignalFeatures.shape
        assert numFeatures == self.numSignals * self.numSignalFeatures, (
            f"{numFeatures} {self.numSignals} {self.numSignalFeatures}")

        B, S, F = batchSize, self.numSignals, self.numSignalFeatures

        if use_pallas_copy:
            # Optional fusion point: lane-dense copy kernel tiled over batch;
            # the (B, S*F) -> (B, S, F) reshape on the kernel output is
            # metadata-only (free).
            flat = _pallas_copy_2d(reshapedSignalFeatures,
                                   alias_input_output=alias_input_output)
            signalFeatures = flat.reshape(B, S, F)
        else:
            # Recommended / production path: pure metadata reshape — zero HBM
            # traffic, zero kernel launch.
            signalFeatures = reshapedSignalFeatures.reshape(B, S, F)

        # TODO(synk): the original calls self.forward(signalFeatures,
        # predictActivity=True, allSignalFeatures=True), but forward() as
        # defined accepts no tensors and returns None — there is no downstream
        # compute to fuse.  We return the reshaped features.
        _ = self.forward()
        return signalFeatures


if __name__ == "__main__":
    # Small deterministic example consistent with the module's shapInterface.
    # S*F = 128 keeps the last dim lane-dense; batch is a multiple of 8.
    batch = 16
    numSignals = 4
    numSignalFeatures = 32

    model = SpecificEmotionModel(
        numCommonSignals=8,
        numActivityFeatures=8,
        activityNames=["walk", "run", "sit"],
        numBasicEmotions=6,
        numInterpreterHeads=4,
        numSubjects=5,
        emotionNames=["happy", "sad", "angry", "calm"],
        featureNames=[f"feat{i}" for i in range(numSignals)],
        numSignals=numSignals,
        numSignalFeatures=numSignalFeatures,
    )

    key = jax.random.PRNGKey(0)
    x = jax.random.normal(
        key, (batch, numSignals * numSignalFeatures), dtype=jnp.float32)

    # forward() semantics check (matches PyTorch: returns None).
    assert model.forward() is None

    ref = x.reshape(batch, numSignals, numSignalFeatures)

    # 1) Default (recommended) path: pure reshape, no kernel.
    out_fast = model.shap_interface(x, use_pallas_copy=False)
    out_fast = jax.block_until_ready(out_fast)
    assert out_fast.shape == (batch, numSignals, numSignalFeatures)
    assert bool(jnp.all(out_fast == ref))

    # 2) Pallas fusion-point path (no aliasing), run once and verify.
    out_pallas = model.shap_interface(x, use_pallas_copy=True)
    out_pallas = jax.block_until_ready(out_pallas)
    assert out_pallas.shape == (batch, numSignals, numSignalFeatures)
    assert bool(jnp.all(out_pallas == ref))

    # 3) Pallas path with input/output aliasing under jit with a donated input
    #    (output reuses the input HBM buffer).
    aliased_fn = jax.jit(
        lambda a: model.shap_interface(a, use_pallas_copy=True,
                                       alias_input_output=True),
        donate_argnums=0)
    x_donate = jnp.array(x)  # fresh buffer we are allowed to donate
    out_alias = jax.block_until_ready(aliased_fn(x_donate))
    assert out_alias.shape == (batch, numSignals, numSignalFeatures)
    assert bool(jnp.all(out_alias == ref))

    print("KERNEL_OK")
</pallas_src>

<mosaic_0001>
module attributes {stable_mosaic.version = 11 : i64} {
  func.func @_identity_copy_kernel(%arg0: i32, %arg1: memref<16x128xf32, #tpu.memory_space<vmem>>, %arg2: memref<16x128xf32, #tpu.memory_space<vmem>>) attributes {dimension_semantics = [#tpu.dimension_semantics<parallel>], iteration_bounds = array<i64: 1>, scalar_prefetch = 0 : i64, scratch_operands = 0 : i64, tpu.core_type = #tpu.core_type<tc>, window_params = [{transform_indices = @transform_0, window_bounds = array<i64: 16, 128>}, {transform_indices = @transform_1, window_bounds = array<i64: 16, 128>}]} {
    %c0 = arith.constant 0 : index
    %c0_0 = arith.constant 0 : index
    %0 = vector.load %arg1[%c0, %c0_0] : memref<16x128xf32, #tpu.memory_space<vmem>>, vector<16x128xf32>
    %c0_1 = arith.constant 0 : index
    %c0_2 = arith.constant 0 : index
    %1 = vector.load %arg2[%c0_1, %c0_2] : memref<16x128xf32, #tpu.memory_space<vmem>>, vector<16x128xf32>
    tpu.vector_store %arg2[%c0_1, %c0_2], %0 {strides = array<i32>} : memref<16x128xf32, #tpu.memory_space<vmem>>, vector<16x128xf32>,
    return
  }
  func.func @transform_0(%arg0: i32) -> (i32, i32) {
    %c0_i32 = arith.constant 0 : i32
    %c0_i32_0 = arith.constant 0 : i32
    return %arg0, %c0_i32 : i32, i32
  }
  func.func @transform_1(%arg0: i32) -> (i32, i32) {
    %c0_i32 = arith.constant 0 : i32
    %c0_i32_0 = arith.constant 0 : i32
    return %arg0, %c0_i32 : i32, i32
  }
}

</mosaic_0001>

<llo_original>
// kernel: tpu_custom_call.1
$region0: #{tpu_custom_call.1}
  #allocation0 [shape = 'u32[]', space=smem, size = 0x4, offset = 0x4, fixed_abs, tag = 'smem constant byte address 0x4 - core index']
  #allocation1 [shape = 'u32[144,128]{1,0:T(1,128)}', space=vmem, size = 0x12000, scoped, tag = 'internal scratch']
  %s0 = inlined_call_operand.hbm [shape: f32[16,128], index: 0, kind: input, shape index: {}]
  %s1 = inlined_call_operand.hbm [shape: f32[16,128], index: 1, kind: output, shape index: {}]
  %s2 = sld [smem:[#allocation0]]
  $region18: #{tpu_custom_call.1} parent=0
    _
  %s4 = ssub.s32 1, %s2
  %s5 = scalar_select 0, %s4, %s2
  $region1: #{tpu_custom_call.1} parent=0
    #allocation2 [shape = 'u8[8192]{0}', space=vmem, size = 0x2000, scoped, tag = 'input window, operand 0, single buffered']
    #allocation3 [shape = 's32[1]{0}', space=sflag, size = 0x4, scoped, tag = 'scoped memory for tpu_custom_call.1']
    #allocation4 [shape = 's32[1]{0}', space=sflag, size = 0x4, scoped, tag = 'scoped memory for tpu_custom_call.1']
    #allocation5 [shape = 'u8[8192]{0}', space=vmem, size = 0x2000, scoped, tag = 'output window, operand 0, single buffered']
    %6 = vsyncpa [#allocation3], 0
    %7 = vsyncpa [#allocation4], 0
    // Predicated region
    $region2: #{tpu_custom_call.1} parent=1 // pred_check
      _
    $region3: #{tpu_custom_call.1} parent=1 // pred_check_branch
      %9 = sbr.rel (0) target = $region5
    $region4: #{tpu_custom_call.1} parent=1 // pred_region
      %s11 = ssub.s32 256, 256
      %12 = vsyncadd [#allocation3], %s11
      %s13 = sshll.u32 [#allocation2], 4
      %s14 = int_to_ptr.vmem [resolvable:$true] %s13
      %19 = dma.hbm_to_vmem [thread:$0]  %s0, 256, %s14, [#allocation3], 128, 128, 8
    $region5: #{tpu_custom_call.1} parent=1 // pred_fallthru
      _
    // Predicated region
    $region6: #{tpu_custom_call.1} parent=1 // pred_check
      _
    $region7: #{tpu_custom_call.1} parent=1 // pred_check_branch
      %21 = sbr.rel (0) target = $region9
    $region8: #{tpu_custom_call.1} parent=1 // pred_region
      %22 = dma.done [#allocation3], 256
    $region9: #{tpu_custom_call.1} parent=1 // pred_fallthru
      _
    %v23 = vld [vmem:[#allocation2] sm:$0xff]
    %v24 = vld [vmem:[#allocation2 + $0x8] sm:$0xff]
    %25 = vst [vmem:[#allocation5] sm:$0xff] %v23
    %26 = vst [vmem:[#allocation5 + $0x8] sm:$0xff] %v24
    // Predicated region
    $region10: #{tpu_custom_call.1} parent=1 // pred_check
      _
    $region11: #{tpu_custom_call.1} parent=1 // pred_check_branch
      %28 = sbr.rel (0) target = $region13
    $region12: #{tpu_custom_call.1} parent=1 // pred_region
      %s30 = ssub.s32 256, 256
      %31 = vsyncadd [#allocation4], %s30
      %s32 = sshll.u32 [#allocation5], 4
      %s33 = int_to_ptr.vmem [resolvable:$true] %s32
      %38 = dma.vmem_to_hbm [thread:$0]  %s33, 256, %s1, [#allocation4], 128, 128, 8
    $region13: #{tpu_custom_call.1} parent=1 // pred_fallthru
      _
    // Predicated region
    $region14: #{tpu_custom_call.1} parent=1 // pred_check
      _
    $region15: #{tpu_custom_call.1} parent=1 // pred_check_branch
      %40 = sbr.rel (0) target = $region17
    $region16: #{tpu_custom_call.1} parent=1 // pred_region
      %41 = dma.done [#allocation4], 256
    $region17: #{tpu_custom_call.1} parent=1 // pred_fallthru
      _
    %42 = vsyncpa [#allocation3], 1
    %43 = vsyncpa [#allocation4], 1

</llo_original>
